<compile_context>
chip_gen: v5e
topology: v5e:2x2
jax: 0.10.0
libtpu: 0.0.40
codegen_flags: <defaults>
</compile_context>

<pallas_src>
import functools

import jax
import jax.numpy as jnp
from jax.experimental import pallas as pl
from jax.experimental.pallas import tpu as pltpu


def _round_up(a, b):
    return ((a + b - 1) // b) * b


# --------------------------------------------------------------------------
# Kernels
# --------------------------------------------------------------------------
def _self_expr_rowslab_kernel(c_ref, x_ref, o_ref, *, precision=None):
    # One (tm, n) @ (n, d) matmul per grid step; x stays VMEM-resident.
    o_ref[...] = jnp.dot(
        c_ref[...], x_ref[...],
        preferred_element_type=jnp.float32,
        precision=precision,
    ).astype(o_ref.dtype)


def _self_expr_tiled_kernel(c_ref, x_ref, o_ref, *, precision=None):
    # Accumulate directly into the VMEM-resident f32 output block.
    # (If the output dtype ever becomes bf16, switch to an f32 scratch acc.)
    @pl.when(pl.program_id(2) == 0)
    def _():
        o_ref[...] = jnp.zeros_like(o_ref)

    o_ref[...] += jnp.dot(
        c_ref[...], x_ref[...],
        preferred_element_type=jnp.float32,
        precision=precision,
    )


# --------------------------------------------------------------------------
# Generation-aware VMEM budgeting
# --------------------------------------------------------------------------
_VMEM_BUDGET_CACHE = None


def _vmem_budget_bytes():
    """~70% of physical per-TensorCore VMEM (90 MiB on v5e/v6e, ~45 MiB v7x)."""
    global _VMEM_BUDGET_CACHE
    if _VMEM_BUDGET_CACHE is None:
        phys = 64 * 1024 * 1024  # conservative fallback (v7x per-TC VMEM)
        try:
            info = pltpu.get_tpu_info()
            cap = int(getattr(info, "vmem_capacity_bytes", 0))
            if cap > 0:
                phys = cap
        except Exception:
            pass
        _VMEM_BUDGET_CACHE = int(0.70 * phys)
    return _VMEM_BUDGET_CACHE


def _vmem_limit(est_bytes, budget):
    # est_bytes already includes per-operand buffer counts; just add fixed
    # headroom for Mosaic internal scratch and cap at the budget.
    return int(min(budget, max(est_bytes + 8 * 1024 * 1024, 16 * 1024 * 1024)))


# --------------------------------------------------------------------------
# Fast path: x (n, d) is VMEM-resident; stream (tm, n) row-slabs of C.
# --------------------------------------------------------------------------
def _fast_path_est(tm, n, d_pad, single_buffer_x):
    x_bufs = 1 if single_buffer_x else 2
    return 4 * (2 * tm * n + x_bufs * n * d_pad + 2 * tm * d_pad)


def _pick_tm_fast(n, d_pad, budget, requested, single_buffer_x):
    """Pick the row-slab height for the fast path, or (None, None) if x can't
    stay VMEM-resident within the budget."""
    n8 = _round_up(n, 8)

    if requested is not None:
        tm = min(_round_up(requested, 8), n8)
        est = _fast_path_est(tm, n, d_pad, single_buffer_x)
        return (tm, est) if est <= budget else (None, None)

    cap = min(512, n8)
    min_div = min(128, n8)

    # Prefer a slab that divides n exactly (no jnp.pad on C, no output slice
    # along M) with a megacore-friendly slab count (even or >= 16).
    if n % 8 == 0:
        fallback_tm = None
        tm = cap
        while tm >= min_div:
            if n % tm == 0:
                est = _fast_path_est(tm, n, d_pad, single_buffer_x)
                if est <= budget:
                    n_slabs = n // tm
                    if n_slabs == 1 or n_slabs % 2 == 0 or n_slabs >= 16:
                        return tm, est
                    if fallback_tm is None:
                        fallback_tm = tm
            tm -= 8
        if fallback_tm is not None:
            return fallback_tm, _fast_path_est(fallback_tm, n, d_pad,
                                               single_buffer_x)

    # No good exact divisor: pad the M dimension, keep slabs large.
    for tm in (512, 256, 128, 64, 32, 16, 8):
        tm = min(tm, n8)
        est = _fast_path_est(tm, n, d_pad, single_buffer_x)
        if est <= budget:
            return tm, est
    return None, None


def _run_fast_path(coefficient, x, n, d, d_pad, tm_fast, est, budget,
                   single_buffer_x, precision):
    m_pad = _round_up(n, tm_fast)

    c_p = coefficient
    if m_pad != n:
        c_p = jnp.pad(coefficient, ((0, m_pad - n), (0, 0)))
    x_p = x
    if d_pad != d:
        x_p = jnp.pad(x, ((0, 0), (0, d_pad - d)))

    # x never changes across the grid -> single VMEM buffer is enough.
    x_spec_kwargs = {}
    if single_buffer_x:
        x_spec_kwargs = dict(pipeline_mode=pl.Buffered(1))

    out = pl.pallas_call(
        functools.partial(_self_expr_rowslab_kernel, precision=precision),
        out_shape=jax.ShapeDtypeStruct((m_pad, d_pad), jnp.float32),
        grid_spec=pltpu.PrefetchScalarGridSpec(
            num_scalar_prefetch=0,
            grid=(m_pad // tm_fast,),
            in_specs=[
                # Row slab of C: (tm, n) -- streams from HBM, double-buffered.
                pl.BlockSpec((tm_fast, n), lambda i: (i, 0)),
                # Whole x: constant block index -> stays VMEM-resident.
                pl.BlockSpec((n, d_pad), lambda i: (0, 0), **x_spec_kwargs),
            ],
            out_specs=pl.BlockSpec((tm_fast, d_pad), lambda i: (i, 0)),
        ),
        compiler_params=pltpu.CompilerParams(
            dimension_semantics=("parallel",),
            vmem_limit_bytes=_vmem_limit(est, budget),
        ),
    )(c_p, x_p)

    if m_pad != n or d_pad != d:
        out = out[:n, :d]
    return out


# --------------------------------------------------------------------------
# Public wrapper
# --------------------------------------------------------------------------
def self_expression_forward(coefficient, x, *, tm=None, tn=None, tk=None,
                            force_tiled=False, precision=None):
    """y = coefficient @ x via a Pallas TPU kernel.

    coefficient: (n, n) float32
    x:           (n, d) float32
    returns:     (n, d) float32
    """
    n, n2 = coefficient.shape
    assert n == n2, "Coefficient must be square (n, n)"
    nk, d = x.shape
    assert nk == n, "x leading dim must match n"

    budget = _vmem_budget_bytes()

    # ------------------------------------------------------------------
    # Fast path: full-K blocks, 1-D parallel grid over C row slabs.
    # C and x are each read from HBM exactly once -> at the HBM roofline.
    # ------------------------------------------------------------------
    if not force_tiled and tn is None and tk is None:
        d_pad = _round_up(d, 128)  # lane-dense output stores
        for single_buffer_x in (True, False):
            tm_fast, est = _pick_tm_fast(n, d_pad, budget, tm, single_buffer_x)
            if tm_fast is None:
                break  # x can't stay resident -> tiled path
            try:
                return _run_fast_path(coefficient, x, n, d, d_pad, tm_fast,
                                      est, budget, single_buffer_x, precision)
            except Exception:
                # Buffered(1) unsupported (or similar) -> retry with default
                # double-buffered x, then fall through to the tiled path.
                continue

    # ------------------------------------------------------------------
    # General tiled path with K accumulation (reduction axis last).
    # ------------------------------------------------------------------
    n128 = _round_up(n, 128)
    d128 = _round_up(d, 128)

    tm = min(_round_up(tm or 256, 8), _round_up(n, 8))
    tk = min(_round_up(tk if tk is not None else 1024, 128), n128)

    def tiled_est(tm_, tn_, tk_):
        return 4 * (2 * tm_ * tk_ + 2 * tk_ * tn_ + 2 * tm_ * tn_)

    if tn is None:
        # Prefer tn = full (padded) feature dim so C streams from HBM once.
        tn = d128 if tiled_est(tm, d128, tk) <= budget else 1024
    tn = min(_round_up(tn, 128), d128)

    # Shrink tiles until the double-buffered footprint fits the budget.
    while tiled_est(tm, tn, tk) > budget and tk > 128:
        tk = _round_up(tk // 2, 128)
    while tiled_est(tm, tn, tk) > budget and tn > 128:
        tn = _round_up(tn // 2, 128)
    while tiled_est(tm, tn, tk) > budget and tm > 8:
        tm = _round_up(tm // 2, 8)

    m_pad = _round_up(n, tm)
    k_pad = _round_up(n, tk)
    d_pad = _round_up(d, tn)

    c_p = coefficient
    if (m_pad, k_pad) != (n, n):
        c_p = jnp.pad(coefficient, ((0, m_pad - n), (0, k_pad - n)))
    x_p = x
    if (k_pad, d_pad) != (n, d):
        x_p = jnp.pad(x, ((0, k_pad - n), (0, d_pad - d)))

    est = tiled_est(tm, tn, tk)
    grid = (m_pad // tm, d_pad // tn, k_pad // tk)

    out = pl.pallas_call(
        functools.partial(_self_expr_tiled_kernel, precision=precision),
        out_shape=jax.ShapeDtypeStruct((m_pad, d_pad), jnp.float32),
        grid_spec=pltpu.PrefetchScalarGridSpec(
            num_scalar_prefetch=0,
            grid=grid,
            in_specs=[
                pl.BlockSpec((tm, tk), lambda i, j, k: (i, k)),  # Coefficient
                pl.BlockSpec((tk, tn), lambda i, j, k: (k, j)),  # x
            ],
            # Same (i, j) block across k -> VMEM-resident accumulator.
            out_specs=pl.BlockSpec((tm, tn), lambda i, j, k: (i, j)),
        ),
        compiler_params=pltpu.CompilerParams(
            dimension_semantics=("parallel", "parallel", "arbitrary"),
            vmem_limit_bytes=_vmem_limit(est, budget),
        ),
    )(c_p, x_p)

    if (m_pad, d_pad) != (n, d):
        out = out[:n, :d]
    return out


if __name__ == "__main__":
    key = jax.random.PRNGKey(0)
    k1, k2, k3, k4 = jax.random.split(key, 4)

    def rel_err(a, b):
        return float(jnp.max(jnp.abs(a - b)) / (jnp.max(jnp.abs(b)) + 1e-12))

    # ---- Test 1: module-consistent small shape, fast path -----------------
    # Exactly like the PyTorch module init: Coefficient = 1e-8 * ones(n, n).
    n, d = 8, 32
    coefficient = 1e-8 * jnp.ones((n, n), dtype=jnp.float32)
    x = jax.random.normal(k1, (n, d), dtype=jnp.float32)

    y = jax.block_until_ready(self_expression_forward(coefficient, x))
    y_ref = coefficient @ x
    assert y.shape == (n, d)
    assert jnp.allclose(y, y_ref, atol=1e-6, rtol=1e-6), "fast path mismatch"

    # ---- Test 2: tiled path with multi-tile K axis and padding ------------
    n2_, d2_ = 160, 192  # not multiples of the tiles -> exercises padding
    coef2 = 0.05 * jax.random.normal(k2, (n2_, n2_), dtype=jnp.float32)
    x2 = jax.random.normal(k3, (n2_, d2_), dtype=jnp.float32)

    y2 = jax.block_until_ready(
        self_expression_forward(coef2, x2, tm=64, tn=128, tk=128,
                                force_tiled=True))
    y2_ref = coef2 @ x2
    assert y2.shape == (n2_, d2_)
    assert rel_err(y2, y2_ref) < 2e-2, "tiled path mismatch"

    # ---- Test 3: fast path with a multi-slab grid and M padding -----------
    n3_, d3_ = 160, 256
    coef3 = 0.05 * jax.random.normal(k4, (n3_, n3_), dtype=jnp.float32)
    x3 = jax.random.normal(k1, (n3_, d3_), dtype=jnp.float32)

    y3 = jax.block_until_ready(self_expression_forward(coef3, x3, tm=64))
    y3_ref = coef3 @ x3
    assert y3.shape == (n3_, d3_)
    assert rel_err(y3, y3_ref) < 2e-2, "fast path (padded) mismatch"

    print("KERNEL_OK")
</pallas_src>

<mosaic_0001>
module attributes {stable_mosaic.version = 11 : i64} {
  func.func @_self_expr_rowslab_kernel(%arg0: i32, %arg1: memref<8x8xf32, #tpu.memory_space<vmem>>, %arg2: memref<8x128xf32, #tpu.memory_space<vmem>>, %arg3: memref<8x128xf32, #tpu.memory_space<vmem>>) attributes {dimension_semantics = [#tpu.dimension_semantics<parallel>], iteration_bounds = array<i64: 1>, scalar_prefetch = 0 : i64, scratch_operands = 0 : i64, tpu.core_type = #tpu.core_type<tc>, window_params = [{transform_indices = @transform_0, window_bounds = array<i64: 8, 8>}, {pipeline_mode = #tpu.pipeline_mode<synchronous>, transform_indices = @transform_1, window_bounds = array<i64: 8, 128>}, {transform_indices = @transform_2, window_bounds = array<i64: 8, 128>}]} {
    %c0 = arith.constant 0 : index
    %c0_0 = arith.constant 0 : index
    %0 = vector.load %arg1[%c0, %c0_0] : memref<8x8xf32, #tpu.memory_space<vmem>>, vector<8x8xf32>
    %c0_1 = arith.constant 0 : index
    %c0_2 = arith.constant 0 : index
    %1 = vector.load %arg2[%c0_1, %c0_2] : memref<8x128xf32, #tpu.memory_space<vmem>>, vector<8x128xf32>
    %cst = arith.constant dense<0.000000e+00> : vector<8x128xf32>
    %2 = tpu.matmul %0, %1, %cst {dimension_numbers = #tpu.dot_dimension_numbers<[1], [0], [0], [1], [0, 0, 1, 1], [], []>} : vector<8x8xf32>, vector<8x128xf32>, vector<8x128xf32> -> vector<8x128xf32>
    %c0_3 = arith.constant 0 : index
    %c0_4 = arith.constant 0 : index
    %3 = vector.load %arg3[%c0_3, %c0_4] : memref<8x128xf32, #tpu.memory_space<vmem>>, vector<8x128xf32>
    tpu.vector_store %arg3[%c0_3, %c0_4], %2 {strides = array<i32>} : memref<8x128xf32, #tpu.memory_space<vmem>>, vector<8x128xf32>,
    return
  }
  func.func @transform_0(%arg0: i32) -> (i32, i32) {
    %c0_i32 = arith.constant 0 : i32
    %c0_i32_0 = arith.constant 0 : i32
    return %arg0, %c0_i32 : i32, i32
  }
  func.func @transform_1(%arg0: i32) -> (i32, i32) {
    %c0_i32 = arith.constant 0 : i32
    %c0_i32_0 = arith.constant 0 : i32
    %c0_i32_1 = arith.constant 0 : i32
    return %c0_i32, %c0_i32_0 : i32, i32
  }
  func.func @transform_2(%arg0: i32) -> (i32, i32) {
    %c0_i32 = arith.constant 0 : i32
    %c0_i32_0 = arith.constant 0 : i32
    return %arg0, %c0_i32 : i32, i32
  }
}

module attributes {stable_mosaic.version = 11 : i64} {
  func.func @_self_expr_rowslab_kernel(%arg0: i32, %arg1: memref<8x8xf32, #tpu.memory_space<vmem>>, %arg2: memref<8x128xf32, #tpu.memory_space<vmem>>, %arg3: memref<8x128xf32, #tpu.memory_space<vmem>>) attributes {dimension_semantics = [#tpu.dimension_semantics<parallel>], iteration_bounds = array<i64: 1>, scalar_prefetch = 0 : i64, scratch_operands = 0 : i64, tpu.core_type = #tpu.core_type<tc>, window_params = [{transform_indices = @transform_0, window_bounds = array<i64: 8, 8>}, {pipeline_mode = #tpu.pipeline_mode<synchronous>, transform_indices = @transform_1, window_bounds = array<i64: 8, 128>}, {transform_indices = @transform_2, window_bounds = array<i64: 8, 128>}]} {
    %c0 = arith.constant 0 : index
    %c0_0 = arith.constant 0 : index
    %0 = vector.load %arg1[%c0, %c0_0] : memref<8x8xf32, #tpu.memory_space<vmem>>, vector<8x8xf32>
    %c0_1 = arith.constant 0 : index
    %c0_2 = arith.constant 0 : index
    %1 = vector.load %arg2[%c0_1, %c0_2] : memref<8x128xf32, #tpu.memory_space<vmem>>, vector<8x128xf32>
    %cst = arith.constant dense<0.000000e+00> : vector<8x128xf32>
    %2 = tpu.matmul %0, %1, %cst {dimension_numbers = #tpu.dot_dimension_numbers<[1], [0], [0], [1], [0, 0, 1, 1], [], []>} : vector<8x8xf32>, vector<8x128xf32>, vector<8x128xf32> -> vector<8x128xf32>
    %c0_3 = arith.constant 0 : index
    %c0_4 = arith.constant 0 : index
    %3 = vector.load %arg3[%c0_3, %c0_4] : memref<8x128xf32, #tpu.memory_space<vmem>>, vector<8x128xf32>
    tpu.vector_store %arg3[%c0_3, %c0_4], %2 {strides = array<i32>} : memref<8x128xf32, #tpu.memory_space<vmem>>, vector<8x128xf32>,
    return
  }
  func.func @transform_0(%arg0: i32) -> (i32, i32) {
    %c0_i32 = arith.constant 0 : i32
    %c0_i32_0 = arith.constant 0 : i32
    return %arg0, %c0_i32 : i32, i32
  }
  func.func @transform_1(%arg0: i32) -> (i32, i32) {
    %c0_i32 = arith.constant 0 : i32
    %c0_i32_0 = arith.constant 0 : i32
    %c0_i32_1 = arith.constant 0 : i32
    return %c0_i32, %c0_i32_0 : i32, i32
  }
  func.func @transform_2(%arg0: i32) -> (i32, i32) {
    %c0_i32 = arith.constant 0 : i32
    %c0_i32_0 = arith.constant 0 : i32
    return %arg0, %c0_i32 : i32, i32
  }
}

module attributes {stable_mosaic.version = 11 : i64} {
  func.func @_self_expr_tiled_kernel(%arg0: i32, %arg1: i32, %arg2: i32, %arg3: memref<8x128xf32, #tpu.memory_space<vmem>>, %arg4: memref<128x128xf32, #tpu.memory_space<vmem>>, %arg5: memref<8x128xf32, #tpu.memory_space<vmem>>) attributes {dimension_semantics = [#tpu.dimension_semantics<parallel>, #tpu.dimension_semantics<parallel>, #tpu.dimension_semantics<arbitrary>], iteration_bounds = array<i64: 1, 1, 1>, scalar_prefetch = 0 : i64, scratch_operands = 0 : i64, tpu.core_type = #tpu.core_type<tc>, window_params = [{transform_indices = @transform_0, window_bounds = array<i64: 8, 128>}, {transform_indices = @transform_1, window_bounds = array<i64: 128, 128>}, {transform_indices = @transform_2, window_bounds = array<i64: 8, 128>}]} {
    %c0_i32 = arith.constant 0 : i32
    %0 = arith.cmpi eq, %arg2, %c0_i32 : i32
    %1 = arith.extui %0 : i1 to i32
    %c0_i32_0 = arith.constant 0 : i32
    %2 = arith.cmpi ne, %1, %c0_i32_0 : i32
    scf.if %2 {
      %cst_8 = arith.constant 0.000000e+00 : f32
      %9 = vector.broadcast %cst_8 : f32 to vector<8x128xf32>
      %c0_9 = arith.constant 0 : index
      %c0_10 = arith.constant 0 : index
      %10 = vector.load %arg5[%c0_9, %c0_10] : memref<8x128xf32, #tpu.memory_space<vmem>>, vector<8x128xf32>
      tpu.vector_store %arg5[%c0_9, %c0_10], %9 {strides = array<i32>} : memref<8x128xf32, #tpu.memory_space<vmem>>, vector<8x128xf32>,
    } else {
    }
    %c0 = arith.constant 0 : index
    %c0_1 = arith.constant 0 : index
    %3 = vector.load %arg5[%c0, %c0_1] : memref<8x128xf32, #tpu.memory_space<vmem>>, vector<8x128xf32>
    %c0_2 = arith.constant 0 : index
    %c0_3 = arith.constant 0 : index
    %4 = vector.load %arg3[%c0_2, %c0_3] : memref<8x128xf32, #tpu.memory_space<vmem>>, vector<8x128xf32>
    %c0_4 = arith.constant 0 : index
    %c0_5 = arith.constant 0 : index
    %5 = vector.load %arg4[%c0_4, %c0_5] : memref<128x128xf32, #tpu.memory_space<vmem>>, vector<128x128xf32>
    %cst = arith.constant dense<0.000000e+00> : vector<8x128xf32>
    %6 = tpu.matmul %4, %5, %cst {dimension_numbers = #tpu.dot_dimension_numbers<[1], [0], [0], [1], [0, 0, 1, 1], [], []>} : vector<8x128xf32>, vector<128x128xf32>, vector<8x128xf32> -> vector<8x128xf32>
    %7 = arith.addf %3, %6 : vector<8x128xf32>
    %c0_6 = arith.constant 0 : index
    %c0_7 = arith.constant 0 : index
    %8 = vector.load %arg5[%c0_6, %c0_7] : memref<8x128xf32, #tpu.memory_space<vmem>>, vector<8x128xf32>
    tpu.vector_store %arg5[%c0_6, %c0_7], %7 {strides = array<i32>} : memref<8x128xf32, #tpu.memory_space<vmem>>, vector<8x128xf32>,
    return
  }
  func.func @transform_0(%arg0: i32, %arg1: i32, %arg2: i32) -> (i32, i32) {
    %c0_i32 = arith.constant 0 : i32
    return %arg0, %arg2 : i32, i32
  }
  func.func @transform_1(%arg0: i32, %arg1: i32, %arg2: i32) -> (i32, i32) {
    %c0_i32 = arith.constant 0 : i32
    return %arg2, %arg1 : i32, i32
  }
  func.func @transform_2(%arg0: i32, %arg1: i32, %arg2: i32) -> (i32, i32) {
    %c0_i32 = arith.constant 0 : i32
    return %arg0, %arg1 : i32, i32
  }
}

</mosaic_0001>

<llo_original>
// kernel: tpu_custom_call.1
$region0: #{tpu_custom_call.1}
  #allocation0 [shape = 'u32[]', space=smem, size = 0x4, offset = 0x4, fixed_abs, tag = 'smem constant byte address 0x4 - core index']
  #allocation1 [shape = 'u32[72,128]{1,0:T(1,128)}', space=vmem, size = 0x9000, scoped, tag = 'internal scratch']
  %s0 = inlined_call_operand.hbm [shape: f32[8,8], index: 0, kind: input, shape index: {}]
  %s1 = inlined_call_operand.hbm [shape: f32[8,128], index: 1, kind: input, shape index: {}]
  %s2 = inlined_call_operand.hbm [shape: f32[8,128], index: 2, kind: output, shape index: {}]
  %s3 = sld [smem:[#allocation0]]
  $region26: #{tpu_custom_call.1} parent=0
    _
  %s5 = ssub.s32 1, %s3
  %s6 = scalar_select 0, %s5, %s3
  $region1: #{tpu_custom_call.1} parent=0
    #allocation2 [shape = 'u8[4096]{0}', space=vmem, size = 0x1000, scoped, tag = 'input window, operand 0, single buffered']
    #allocation3 [shape = 's32[1]{0}', space=sflag, size = 0x4, scoped, tag = 'scoped memory for tpu_custom_call.1']
    #allocation4 [shape = 's32[1]{0}', space=sflag, size = 0x4, scoped, tag = 'scoped memory for tpu_custom_call.1']
    #allocation5 [shape = 'u8[4096]{0}', space=vmem, size = 0x1000, scoped, tag = 'input window, operand 1, single buffered']
    #allocation6 [shape = 's32[1]{0}', space=sflag, size = 0x4, scoped, tag = 'scoped memory for tpu_custom_call.1']
    #allocation7 [shape = 'u8[4096]{0}', space=vmem, size = 0x1000, scoped, tag = 'output window, operand 0, single buffered']
    %7 = vsyncpa [#allocation3], 0
    %8 = vsyncpa [#allocation6], 0
    %9 = vsyncpa [#allocation4], 0
    // Predicated region
    $region2: #{tpu_custom_call.1} parent=1 // pred_check
      _
    $region3: #{tpu_custom_call.1} parent=1 // pred_check_branch
      %11 = sbr.rel (0) target = $region5
    $region4: #{tpu_custom_call.1} parent=1 // pred_region
      %13 = vsyncadd [#allocation3], 0
      %s15 = sshll.u32 %s0, 4
      %s16 = int_to_ptr.hbm [resolvable:$true] %s15
      %s17 = sshll.u32 [#allocation2], 4
      %s18 = int_to_ptr.vmem [resolvable:$true] %s17
      %20 = dma.hbm_to_vmem [thread:$0]  %s16, 128, %s18, [#allocation3]
    $region5: #{tpu_custom_call.1} parent=1 // pred_fallthru
      _
    // Predicated region
    $region6: #{tpu_custom_call.1} parent=1 // pred_check
      _
    $region7: #{tpu_custom_call.1} parent=1 // pred_check_branch
      %22 = sbr.rel (0) target = $region9
    $region8: #{tpu_custom_call.1} parent=1 // pred_region
      %24 = vsyncadd [#allocation6], 0
      %s26 = sshll.u32 %s1, 4
      %s27 = int_to_ptr.hbm [resolvable:$true] %s26
      %s28 = sshll.u32 [#allocation5], 4
      %s29 = int_to_ptr.vmem [resolvable:$true] %s28
      %31 = dma.hbm_to_vmem [thread:$0]  %s27, 128, %s29, [#allocation6]
    $region9: #{tpu_custom_call.1} parent=1 // pred_fallthru
      _
    // Predicated region
    $region10: #{tpu_custom_call.1} parent=1 // pred_check
      _
    $region11: #{tpu_custom_call.1} parent=1 // pred_check_branch
      %33 = sbr.rel (0) target = $region13
    $region12: #{tpu_custom_call.1} parent=1 // pred_region
      %35 = dma.done [#allocation3], 128
    $region13: #{tpu_custom_call.1} parent=1 // pred_fallthru
      _
    // Predicated region
    $region14: #{tpu_custom_call.1} parent=1 // pred_check
      _
    $region15: #{tpu_custom_call.1} parent=1 // pred_check_branch
      %37 = sbr.rel (0) target = $region17
    $region16: #{tpu_custom_call.1} parent=1 // pred_region
      %39 = dma.done [#allocation6], 128
    $region17: #{tpu_custom_call.1} parent=1 // pred_fallthru
      _
    %v40 = vld [vmem:[#allocation2] sm:$0xff]
    %v41 = vld [vmem:[#allocation5] sm:$0xff]
    %vm42 = vcmask 64512
    %v44 = vsel %vm42, %v40, 0
    %46 = vmatpush.msra.mxu0 0.0
    %47 = vmatpush.msra.mxu0 0.0
    %48 = vmatpush.msra.mxu0 0.0
    %49 = vmatpush.msra.mxu0 0.0
    %50 = vmatpush.msra.mxu0 0.0
    %51 = vmatpush.msra.mxu0 0.0
    %52 = vmatpush.msra.mxu0 0.0
    %53 = vmatpush.msra.mxu0 0.0
    %54 = vmatpush.msra.mxu0 0.0
    %55 = vmatpush.msra.mxu0 0.0
    %56 = vmatpush.msra.mxu0 0.0
    %57 = vmatpush.msra.mxu0 0.0
    %58 = vmatpush.msra.mxu0 0.0
    %59 = vmatpush.msra.mxu0 0.0
    %60 = vmatpush.msra.mxu0 0.0
    %61 = vmatpush.msra.mxu0 %v41
    %62 = vmatmul.f32.gmra.mxu0 %v44
    %v63 = vpop.f32.mrf.mxu0
    %v64 = vadd.f32 0.0, %v63
    %65 = vdwg.mxu0
    %66 = vst [vmem:[#allocation7] sm:$0xff] %v64
    // Predicated region
    $region18: #{tpu_custom_call.1} parent=1 // pred_check
      _
    $region19: #{tpu_custom_call.1} parent=1 // pred_check_branch
      %68 = sbr.rel (0) target = $region21
    $region20: #{tpu_custom_call.1} parent=1 // pred_region
      %70 = vsyncadd [#allocation4], 0
      %s72 = sshll.u32 [#allocation7], 4
      %s73 = int_to_ptr.vmem [resolvable:$true] %s72
      %s74 = sshll.u32 %s2, 4
      %s75 = int_to_ptr.hbm [resolvable:$true] %s74
      %77 = dma.vmem_to_hbm [thread:$0]  %s73, 128, %s75, [#allocation4]
    $region21: #{tpu_custom_call.1} parent=1 // pred_fallthru
      _
    // Predicated region
    $region22: #{tpu_custom_call.1} parent=1 // pred_check
      _
    $region23: #{tpu_custom_call.1} parent=1 // pred_check_branch
      %79 = sbr.rel (0) target = $region25
    $region24: #{tpu_custom_call.1} parent=1 // pred_region
      %81 = dma.done [#allocation4], 128
    $region25: #{tpu_custom_call.1} parent=1 // pred_fallthru
      _
    %82 = vsyncpa [#allocation3], 1
    %83 = vsyncpa [#allocation6], 1
    %84 = vsyncpa [#allocation4], 1

// kernel: tpu_custom_call.1
$region0: #{tpu_custom_call.1}
  #allocation0 [shape = 'u32[]', space=smem, size = 0x4, offset = 0x4, fixed_abs, tag = 'smem constant byte address 0x4 - core index']
  #allocation1 [shape = 'u32[72,128]{1,0:T(1,128)}', space=vmem, size = 0x9000, scoped, tag = 'internal scratch']
  %s0 = inlined_call_operand.hbm [shape: f32[8,8], index: 0, kind: input, shape index: {}]
  %s1 = inlined_call_operand.hbm [shape: f32[8,128], index: 1, kind: input, shape index: {}]
  %s2 = inlined_call_operand.hbm [shape: f32[8,128], index: 2, kind: output, shape index: {}]
  %s3 = sld [smem:[#allocation0]]
  $region26: #{tpu_custom_call.1} parent=0
    _
  %s5 = ssub.s32 1, %s3
  %s6 = scalar_select 0, %s5, %s3
  $region1: #{tpu_custom_call.1} parent=0
    #allocation2 [shape = 'u8[4096]{0}', space=vmem, size = 0x1000, scoped, tag = 'input window, operand 0, single buffered']
    #allocation3 [shape = 's32[1]{0}', space=sflag, size = 0x4, scoped, tag = 'scoped memory for tpu_custom_call.1']
    #allocation4 [shape = 's32[1]{0}', space=sflag, size = 0x4, scoped, tag = 'scoped memory for tpu_custom_call.1']
    #allocation5 [shape = 'u8[4096]{0}', space=vmem, size = 0x1000, scoped, tag = 'input window, operand 1, single buffered']
    #allocation6 [shape = 's32[1]{0}', space=sflag, size = 0x4, scoped, tag = 'scoped memory for tpu_custom_call.1']
    #allocation7 [shape = 'u8[4096]{0}', space=vmem, size = 0x1000, scoped, tag = 'output window, operand 0, single buffered']
    %7 = vsyncpa [#allocation3], 0
    %8 = vsyncpa [#allocation6], 0
    %9 = vsyncpa [#allocation4], 0
    // Predicated region
    $region2: #{tpu_custom_call.1} parent=1 // pred_check
      _
    $region3: #{tpu_custom_call.1} parent=1 // pred_check_branch
      %11 = sbr.rel (0) target = $region5
    $region4: #{tpu_custom_call.1} parent=1 // pred_region
      %13 = vsyncadd [#allocation3], 0
      %s15 = sshll.u32 %s0, 4
      %s16 = int_to_ptr.hbm [resolvable:$true] %s15
      %s17 = sshll.u32 [#allocation2], 4
      %s18 = int_to_ptr.vmem [resolvable:$true] %s17
      %20 = dma.hbm_to_vmem [thread:$0]  %s16, 128, %s18, [#allocation3]
    $region5: #{tpu_custom_call.1} parent=1 // pred_fallthru
      _
    // Predicated region
    $region6: #{tpu_custom_call.1} parent=1 // pred_check
      _
    $region7: #{tpu_custom_call.1} parent=1 // pred_check_branch
      %22 = sbr.rel (0) target = $region9
    $region8: #{tpu_custom_call.1} parent=1 // pred_region
      %24 = vsyncadd [#allocation6], 0
      %s26 = sshll.u32 %s1, 4
      %s27 = int_to_ptr.hbm [resolvable:$true] %s26
      %s28 = sshll.u32 [#allocation5], 4
      %s29 = int_to_ptr.vmem [resolvable:$true] %s28
      %31 = dma.hbm_to_vmem [thread:$0]  %s27, 128, %s29, [#allocation6]
    $region9: #{tpu_custom_call.1} parent=1 // pred_fallthru
      _
    // Predicated region
    $region10: #{tpu_custom_call.1} parent=1 // pred_check
      _
    $region11: #{tpu_custom_call.1} parent=1 // pred_check_branch
      %33 = sbr.rel (0) target = $region13
    $region12: #{tpu_custom_call.1} parent=1 // pred_region
      %35 = dma.done [#allocation3], 128
    $region13: #{tpu_custom_call.1} parent=1 // pred_fallthru
      _
    // Predicated region
    $region14: #{tpu_custom_call.1} parent=1 // pred_check
      _
    $region15: #{tpu_custom_call.1} parent=1 // pred_check_branch
      %37 = sbr.rel (0) target = $region17
    $region16: #{tpu_custom_call.1} parent=1 // pred_region
      %39 = dma.done [#allocation6], 128
    $region17: #{tpu_custom_call.1} parent=1 // pred_fallthru
      _
    %v40 = vld [vmem:[#allocation2] sm:$0xff]
    %v41 = vld [vmem:[#allocation5] sm:$0xff]
    %vm42 = vcmask 64512
    %v44 = vsel %vm42, %v40, 0
    %46 = vmatpush.msra.mxu0 0.0
    %47 = vmatpush.msra.mxu0 0.0
    %48 = vmatpush.msra.mxu0 0.0
    %49 = vmatpush.msra.mxu0 0.0
    %50 = vmatpush.msra.mxu0 0.0
    %51 = vmatpush.msra.mxu0 0.0
    %52 = vmatpush.msra.mxu0 0.0
    %53 = vmatpush.msra.mxu0 0.0
    %54 = vmatpush.msra.mxu0 0.0
    %55 = vmatpush.msra.mxu0 0.0
    %56 = vmatpush.msra.mxu0 0.0
    %57 = vmatpush.msra.mxu0 0.0
    %58 = vmatpush.msra.mxu0 0.0
    %59 = vmatpush.msra.mxu0 0.0
    %60 = vmatpush.msra.mxu0 0.0
    %61 = vmatpush.msra.mxu0 %v41
    %62 = vmatmul.f32.gmra.mxu0 %v44
    %v63 = vpop.f32.mrf.mxu0
    %v64 = vadd.f32 0.0, %v63
    %65 = vdwg.mxu0
    %66 = vst [vmem:[#allocation7] sm:$0xff] %v64
    // Predicated region
    $region18: #{tpu_custom_call.1} parent=1 // pred_check
      _
    $region19: #{tpu_custom_call.1} parent=1 // pred_check_branch
      %68 = sbr.rel (0) target = $region21
    $region20: #{tpu_custom_call.1} parent=1 // pred_region
      %70 = vsyncadd [#allocation4], 0
      %s72 = sshll.u32 [#allocation7], 4
      %s73 = int_to_ptr.vmem [resolvable:$true] %s72
      %s74 = sshll.u32 %s2, 4
      %s75 = int_to_ptr.hbm [resolvable:$true] %s74
      %77 = dma.vmem_to_hbm [thread:$0]  %s73, 128, %s75, [#allocation4]
    $region21: #{tpu_custom_call.1} parent=1 // pred_fallthru
      _
    // Predicated region
    $region22: #{tpu_custom_call.1} parent=1 // pred_check
      _
    $region23: #{tpu_custom_call.1} parent=1 // pred_check_branch
      %79 = sbr.rel (0) target = $region25
    $region24: #{tpu_custom_call.1} parent=1 // pred_region
      %81 = dma.done [#allocation4], 128
    $region25: #{tpu_custom_call.1} parent=1 // pred_fallthru
      _
    %82 = vsyncpa [#allocation3], 1
    %83 = vsyncpa [#allocation6], 1
    %84 = vsyncpa [#allocation4], 1

// kernel: tpu_custom_call.1
$region0: #{tpu_custom_call.1}
  #allocation0 [shape = 'u32[]', space=smem, size = 0x4, offset = 0x4, fixed_abs, tag = 'smem constant byte address 0x4 - core index']
  #allocation1 [shape = 'u32[72,128]{1,0:T(1,128)}', space=vmem, size = 0x9000, scoped, tag = 'internal scratch']
  %s0 = inlined_call_operand.hbm [shape: f32[8,128], index: 0, kind: input, shape index: {}]
  %s1 = inlined_call_operand.hbm [shape: f32[128,128], index: 1, kind: input, shape index: {}]
  %s2 = inlined_call_operand.hbm [shape: f32[8,128], index: 2, kind: output, shape index: {}]
  %s3 = sld [smem:[#allocation0]]
  $region30: #{tpu_custom_call.1} parent=0
    _
  %s5 = ssub.s32 1, %s3
  %s6 = scalar_select 0, %s5, %s3
  $region1: #{tpu_custom_call.1} parent=0
    #allocation2 [shape = 'u8[4096]{0}', space=vmem, size = 0x1000, scoped, tag = 'input window, operand 0, single buffered']
    #allocation3 [shape = 's32[1]{0}', space=sflag, size = 0x4, scoped, tag = 'scoped memory for tpu_custom_call.1']
    #allocation4 [shape = 's32[1]{0}', space=sflag, size = 0x4, scoped, tag = 'scoped memory for tpu_custom_call.1']
    #allocation5 [shape = 'u8[65536]{0}', space=vmem, size = 0x10000, scoped, tag = 'input window, operand 1, single buffered']
    #allocation6 [shape = 's32[1]{0}', space=sflag, size = 0x4, scoped, tag = 'scoped memory for tpu_custom_call.1']
    #allocation7 [shape = 'u8[4096]{0}', space=vmem, size = 0x1000, scoped, tag = 'output window, operand 0, single buffered']
    %7 = vsyncpa [#allocation3], 0
    %8 = vsyncpa [#allocation6], 0
    %9 = vsyncpa [#allocation4], 0
    // Predicated region
    $region2: #{tpu_custom_call.1} parent=1 // pred_check
      _
    $region3: #{tpu_custom_call.1} parent=1 // pred_check_branch
      %11 = sbr.rel (0) target = $region5
    $region4: #{tpu_custom_call.1} parent=1 // pred_region
      %13 = vsyncadd [#allocation3], 0
      %s15 = sshll.u32 %s0, 4
      %s16 = int_to_ptr.hbm [resolvable:$true] %s15
      %s17 = sshll.u32 [#allocation2], 4
      %s18 = int_to_ptr.vmem [resolvable:$true] %s17
      %20 = dma.hbm_to_vmem [thread:$0]  %s16, 128, %s18, [#allocation3]
    $region5: #{tpu_custom_call.1} parent=1 // pred_fallthru
      _
    // Predicated region
    $region6: #{tpu_custom_call.1} parent=1 // pred_check
      _
    $region7: #{tpu_custom_call.1} parent=1 // pred_check_branch
      %22 = sbr.rel (0) target = $region9
    $region8: #{tpu_custom_call.1} parent=1 // pred_region
      %24 = vsyncadd [#allocation6], 0
      %s25 = sshll.u32 %s1, 4
      %s26 = int_to_ptr.hbm [resolvable:$true] %s25
      %s27 = sshll.u32 [#allocation5], 4
      %s28 = int_to_ptr.vmem [resolvable:$true] %s27
      %33 = dma.hbm_to_vmem [thread:$0]  %s26, 2048, %s28, [#allocation6], 128, 128, 8
    $region9: #{tpu_custom_call.1} parent=1 // pred_fallthru
      _
    // Predicated region
    $region10: #{tpu_custom_call.1} parent=1 // pred_check
      _
    $region11: #{tpu_custom_call.1} parent=1 // pred_check_branch
      %35 = sbr.rel (0) target = $region13
    $region12: #{tpu_custom_call.1} parent=1 // pred_region
      %37 = dma.done [#allocation3], 128
    $region13: #{tpu_custom_call.1} parent=1 // pred_fallthru
      _
    // Predicated region
    $region14: #{tpu_custom_call.1} parent=1 // pred_check
      _
    $region15: #{tpu_custom_call.1} parent=1 // pred_check_branch
      %39 = sbr.rel (0) target = $region17
    $region16: #{tpu_custom_call.1} parent=1 // pred_region
      %41 = dma.done [#allocation6], 2048
    $region17: #{tpu_custom_call.1} parent=1 // pred_fallthru
      _
    %p42 = scmp.eq.s32.totalorder 0, 0
    // Predicated region
    $region18: #{tpu_custom_call.1} parent=1 // pred_check
      %p43 = pneg %p42
    $region19: #{tpu_custom_call.1} parent=1 // pred_check_branch
      %45 = sbr.rel (%p43) target = $region21
    $region20: #{tpu_custom_call.1} parent=1 // pred_region
      %46 = vst [vmem:[#allocation7] sm:$0xff] 0.0
    $region21: #{tpu_custom_call.1} parent=1 // pred_fallthru
      _
    %v47 = vld [vmem:[#allocation7] sm:$0xff]
    %v48 = vld [vmem:[#allocation2] sm:$0xff]
    %v49 = vld [vmem:[#allocation5] sm:$0xff]
    %v50 = vld [vmem:[#allocation5 + $0x8] sm:$0xff]
    %v51 = vld [vmem:[#allocation5 + $0x10] sm:$0xff]
    %v52 = vld [vmem:[#allocation5 + $0x18] sm:$0xff]
    %v53 = vld [vmem:[#allocation5 + $0x20] sm:$0xff]
    %v54 = vld [vmem:[#allocation5 + $0x28] sm:$0xff]
    %v55 = vld [vmem:[#allocation5 + $0x30] sm:$0xff]
    %v56 = vld [vmem:[#allocation5 + $0x38] sm:$0xff]
    %v57 = vld [vmem:[#allocation5 + $0x40] sm:$0xff]
    %v58 = vld [vmem:[#allocation5 + $0x48] sm:$0xff]
    %v59 = vld [vmem:[#allocation5 + $0x50] sm:$0xff]
    %v60 = vld [vmem:[#allocation5 + $0x58] sm:$0xff]
    %v61 = vld [vmem:[#allocation5 + $0x60] sm:$0xff]
    %v62 = vld [vmem:[#allocation5 + $0x68] sm:$0xff]
    %v63 = vld [vmem:[#allocation5 + $0x70] sm:$0xff]
    %v64 = vld [vmem:[#allocation5 + $0x78] sm:$0xff]
    %65 = vmatpush.msra.mxu0 %v64
    %66 = vmatpush.msra.mxu0 %v63
    %67 = vmatpush.msra.mxu0 %v62
    %68 = vmatpush.msra.mxu0 %v61
    %69 = vmatpush.msra.mxu0 %v60
    %70 = vmatpush.msra.mxu0 %v59
    %71 = vmatpush.msra.mxu0 %v58
    %72 = vmatpush.msra.mxu0 %v57
    %73 = vmatpush.msra.mxu0 %v56
    %74 = vmatpush.msra.mxu0 %v55
    %75 = vmatpush.msra.mxu0 %v54
    %76 = vmatpush.msra.mxu0 %v53
    %77 = vmatpush.msra.mxu0 %v52
    %78 = vmatpush.msra.mxu0 %v51
    %79 = vmatpush.msra.mxu0 %v50
    %80 = vmatpush.msra.mxu0 %v49
    %81 = vmatmul.f32.gmra.mxu0 %v48
    %v82 = vpop.f32.mrf.mxu0
    %v83 = vadd.f32 0.0, %v82
    %84 = vdwg.mxu0
    %v85 = vadd.f32 %v47, %v83
    %86 = vst [vmem:[#allocation7] sm:$0xff] %v85
    // Predicated region
    $region22: #{tpu_custom_call.1} parent=1 // pred_check
      _
    $region23: #{tpu_custom_call.1} parent=1 // pred_check_branch
      %88 = sbr.rel (0) target = $region25
    $region24: #{tpu_custom_call.1} parent=1 // pred_region
      %90 = vsyncadd [#allocation4], 0
      %s92 = sshll.u32 [#allocation7], 4
      %s93 = int_to_ptr.vmem [resolvable:$true] %s92
      %s94 = sshll.u32 %s2, 4
      %s95 = int_to_ptr.hbm [resolvable:$true] %s94
      %97 = dma.vmem_to_hbm [thread:$0]  %s93, 128, %s95, [#allocation4]
    $region25: #{tpu_custom_call.1} parent=1 // pred_fallthru
      _
    // Predicated region
    $region26: #{tpu_custom_call.1} parent=1 // pred_check
      _
    $region27: #{tpu_custom_call.1} parent=1 // pred_check_branch
      %99 = sbr.rel (0) target = $region29
    $region28: #{tpu_custom_call.1} parent=1 // pred_region
      %101 = dma.done [#allocation4], 128
    $region29: #{tpu_custom_call.1} parent=1 // pred_fallthru
      _
    %102 = vsyncpa [#allocation3], 1
    %103 = vsyncpa [#allocation6], 1
    %104 = vsyncpa [#allocation4], 1

</llo_original>
